<compile_context>
chip_gen: v6e
topology: v6e:2x2x1
jax: 0.10.0
libtpu: 0.0.40
codegen_flags: <defaults>
</compile_context>

<pallas_src>
import jax
import jax.numpy as jnp
import numpy as np
from jax.experimental import pallas as pl
from jax.experimental.pallas import tpu as pltpu


# ------------------------------------------------------------------ Pallas kernel
def conv1x1_bias_kernel(x_ref, w_ref, b_ref, o_ref):
    """Fused 1x1 conv + bias, NCHW layout, flattened spatial on the lane dim.

    x_ref : (BN, Cin, T)   activation tile (T = spatial tile, lane-dense)
    w_ref : (Cout, Cin)    conv weight (resident across the grid)
    b_ref : (Cout, 1)      conv bias   (broadcast over batch & spatial lanes)
    o_ref : (BN, Cout, T)  output tile (lane-dense stores along T)
    """
    x = x_ref[...]                                   # (BN, Cin, T)
    w = w_ref[...]                                   # (Cout, Cin)
    acc = jnp.einsum('oc,bct->bot', w, x,
                     preferred_element_type=jnp.float32)        # MXU contraction
    bias = b_ref[...].astype(jnp.float32)            # (Cout, 1)
    o_ref[...] = (acc + bias[None, :, :]).astype(o_ref.dtype)


# ------------------------------------------------------------------ wrapper
def out_conv(x_nchw, w_oi, bias, *, vmem_tile_budget_bytes=10 << 20, max_tile=65536):
    """OutConv forward: 1x1 Conv2d with bias.  x is NCHW (PyTorch convention).

    x_nchw : (N, Cin, H, W)
    w_oi   : (Cout, Cin)    (PyTorch OIHW weight with the trailing 1x1 squeezed)
    bias   : (Cout,)
    """
    N, Cin, H, W = x_nchw.shape
    Cout = w_oi.shape[0]
    HW = H * W
    itemsize = jnp.dtype(x_nchw.dtype).itemsize

    x_flat = x_nchw.reshape(N, Cin, HW)              # lane dim = HW

    # --- tile selection -------------------------------------------------------
    # Double-buffered in+out traffic for the WHOLE problem; if tiny, run one step.
    total_db_bytes = 2 * (Cin + Cout) * N * HW * itemsize
    if total_db_bytes <= vmem_tile_budget_bytes:
        BN, T = N, HW                                # fold batch -> single grid step
    else:
        BN = 1
        # Budget double-buffered (input + output) tile bytes; round T to 128.
        per_lane_bytes = 2 * (Cin + Cout) * itemsize
        t_budget = max(128, (vmem_tile_budget_bytes // per_lane_bytes) // 128 * 128)
        T = int(min(t_budget, max_tile))
        if HW <= T:
            T = HW                                   # full extent (always legal)

    # Spatial-tile axis leads (v7x megacore balance when N == 1); cdiv handles
    # ragged last blocks when HW is not a multiple of T.
    grid = (pl.cdiv(HW, T), N // BN)

    out = pl.pallas_call(
        conv1x1_bias_kernel,
        out_shape=jax.ShapeDtypeStruct((N, Cout, HW), x_nchw.dtype),
        grid=grid,
        in_specs=[
            pl.BlockSpec((BN, Cin, T), lambda t, n: (n, 0, t)),
            pl.BlockSpec((Cout, Cin), lambda t, n: (0, 0)),
            pl.BlockSpec((Cout, 1), lambda t, n: (0, 0)),
        ],
        out_specs=pl.BlockSpec((BN, Cout, T), lambda t, n: (n, 0, t)),
        compiler_params=pltpu.CompilerParams(
            # No reduction axis; both axes independent -> megacore sharding on v7x.
            dimension_semantics=("parallel", "parallel"),
        ),
        cost_estimate=pl.CostEstimate(
            flops=2 * N * Cout * Cin * HW,
            bytes_accessed=itemsize * (N * (Cin + Cout) * HW + Cout * Cin + Cout),
            transcendentals=0,
        ),
    )(x_flat, w_oi, bias.reshape(Cout, 1))

    return out.reshape(N, Cout, H, W)


# ------------------------------------------------------------------ reference (XLA)
def ref_out_conv(x_nchw, w_oi, bias):
    y = jnp.einsum('oc,nchw->nohw', w_oi, x_nchw)
    return y + bias[None, :, None, None]


# ------------------------------------------------------------------ main
if __name__ == "__main__":
    # Small shapes consistent with OutConv at the end of a UNet:
    #   x: (N=2, Cin=8, H=16, W=16), out_channels=4  -> HW = 256 (lane-dense)
    N, Cin, H, W = 2, 8, 16, 16
    Cout = 4

    key = jax.random.PRNGKey(0)
    k_x, k_w, k_b = jax.random.split(key, 3)

    x = jax.random.normal(k_x, (N, Cin, H, W), jnp.float32)
    # PyTorch Conv2d(k=1) weight has shape (Cout, Cin, 1, 1); squeeze the 1x1 taps.
    w_oihw = 0.1 * jax.random.normal(k_w, (Cout, Cin, 1, 1), jnp.float32)
    b = 0.1 * jax.random.normal(k_b, (Cout,), jnp.float32)
    w_oi = w_oihw[:, :, 0, 0]

    out = out_conv(x, w_oi, b)
    out = jax.block_until_ready(out)
    assert out.shape == (N, Cout, H, W), out.shape

    ref = jax.block_until_ready(ref_out_conv(x, w_oi, b))
    np.testing.assert_allclose(np.asarray(out), np.asarray(ref), rtol=1e-5, atol=1e-5)

    print("KERNEL_OK")
</pallas_src>

<mosaic_0001>
module attributes {stable_mosaic.version = 11 : i64} {
  func.func @conv1x1_bias_kernel(%arg0: i32, %arg1: i32, %arg2: memref<2x8x256xf32, #tpu.memory_space<vmem>>, %arg3: memref<4x8xf32, #tpu.memory_space<vmem>>, %arg4: memref<4x1xf32, #tpu.memory_space<vmem>>, %arg5: memref<2x4x256xf32, #tpu.memory_space<vmem>>) attributes {dimension_semantics = [#tpu.dimension_semantics<parallel>, #tpu.dimension_semantics<parallel>], iteration_bounds = array<i64: 1, 1>, scalar_prefetch = 0 : i64, scratch_operands = 0 : i64, tpu.core_type = #tpu.core_type<tc>, window_params = [{transform_indices = @transform_0, window_bounds = array<i64: 2, 8, 256>}, {pipeline_mode = #tpu.pipeline_mode<synchronous>, transform_indices = @transform_1, window_bounds = array<i64: 4, 8>}, {pipeline_mode = #tpu.pipeline_mode<synchronous>, transform_indices = @transform_2, window_bounds = array<i64: 4, 1>}, {transform_indices = @transform_3, window_bounds = array<i64: 2, 4, 256>}]} {
    %c0 = arith.constant 0 : index
    %c0_0 = arith.constant 0 : index
    %c0_1 = arith.constant 0 : index
    %0 = vector.load %arg2[%c0, %c0_0, %c0_1] : memref<2x8x256xf32, #tpu.memory_space<vmem>>, vector<2x8x256xf32>
    %c0_2 = arith.constant 0 : index
    %c0_3 = arith.constant 0 : index
    %1 = vector.load %arg3[%c0_2, %c0_3] : memref<4x8xf32, #tpu.memory_space<vmem>>, vector<4x8xf32>
    "tpu.trace_start"() <{level = 10 : i32, message = "oc,bct->bot"}> : () -> ()
    %cst = arith.constant dense<0.000000e+00> : vector<2x256x4xf32>
    %2 = tpu.matmul %0, %1, %cst {dimension_numbers = #tpu.dot_dimension_numbers<[1], [1], [0, 2], [0], [0, 0, 0, 2, 1, 0], [], []>} : vector<2x8x256xf32>, vector<4x8xf32>, vector<2x256x4xf32> -> vector<2x256x4xf32>
    %3 = tpu.transpose %2, [0, 2, 1] : vector<2x256x4xf32> -> vector<2x4x256xf32>
    "tpu.trace_stop"() : () -> ()
    %c0_4 = arith.constant 0 : index
    %c0_5 = arith.constant 0 : index
    %4 = vector.load %arg4[%c0_4, %c0_5] : memref<4x1xf32, #tpu.memory_space<vmem>>, vector<4x1xf32>
    %5 = vector.shape_cast %4 : vector<4x1xf32> to vector<1x4x1xf32>
    %6 = vector.broadcast %5 : vector<1x4x1xf32> to vector<2x4x256xf32>
    %7 = arith.addf %3, %6 : vector<2x4x256xf32>
    %c0_6 = arith.constant 0 : index
    %c0_7 = arith.constant 0 : index
    %c0_8 = arith.constant 0 : index
    %8 = vector.load %arg5[%c0_6, %c0_7, %c0_8] : memref<2x4x256xf32, #tpu.memory_space<vmem>>, vector<2x4x256xf32>
    tpu.vector_store %arg5[%c0_6, %c0_7, %c0_8], %7 {strides = array<i32>} : memref<2x4x256xf32, #tpu.memory_space<vmem>>, vector<2x4x256xf32>,
    return
  }
  func.func @transform_0(%arg0: i32, %arg1: i32) -> (i32, i32, i32) {
    %c0_i32 = arith.constant 0 : i32
    %c0_i32_0 = arith.constant 0 : i32
    return %arg1, %c0_i32, %arg0 : i32, i32, i32
  }
  func.func @transform_1(%arg0: i32, %arg1: i32) -> (i32, i32) {
    %c0_i32 = arith.constant 0 : i32
    %c0_i32_0 = arith.constant 0 : i32
    %c0_i32_1 = arith.constant 0 : i32
    return %c0_i32, %c0_i32_0 : i32, i32
  }
  func.func @transform_2(%arg0: i32, %arg1: i32) -> (i32, i32) {
    %c0_i32 = arith.constant 0 : i32
    %c0_i32_0 = arith.constant 0 : i32
    %c0_i32_1 = arith.constant 0 : i32
    return %c0_i32, %c0_i32_0 : i32, i32
  }
  func.func @transform_3(%arg0: i32, %arg1: i32) -> (i32, i32, i32) {
    %c0_i32 = arith.constant 0 : i32
    %c0_i32_0 = arith.constant 0 : i32
    return %arg1, %c0_i32, %arg0 : i32, i32, i32
  }
}

</mosaic_0001>

<llo_original>
// kernel: tpu_custom_call.1
$region0: #{tpu_custom_call.1}
  #allocation0 [shape = 'u32[]', space=smem, size = 0x4, offset = 0x4, fixed_abs, tag = 'smem constant byte address 0x4 - core index']
  #allocation1 [shape = 'u32[144,128]{1,0:T(1,128)}', space=vmem, size = 0x12000, scoped, tag = 'internal scratch']
  %s0 = inlined_call_operand.hbm [shape: f32[2,8,256], index: 0, kind: input, shape index: {}]
  %s1 = inlined_call_operand.vmem [shape: f32[4,8], index: 1, kind: input, shape index: {}]
  %s2 = inlined_call_operand.vmem [shape: f32[4,1], index: 2, kind: input, shape index: {}]
  %s3 = inlined_call_operand.hbm [shape: f32[2,4,256], index: 3, kind: output, shape index: {}]
  %s4 = sld [smem:[#allocation0]]
  $region26: #{tpu_custom_call.1} parent=0
    _
  %s6 = ssub.s32 1, %s4
  %s7 = scalar_select 0, %s6, %s4
  $region1: #{tpu_custom_call.1} parent=0
    #allocation2 [shape = 'u8[16384]{0}', space=vmem, size = 0x4000, scoped, tag = 'input window, operand 0, single buffered']
    #allocation3 [shape = 's32[1]{0}', space=sflag, size = 0x4, scoped, tag = 'scoped memory for tpu_custom_call.1']
    #allocation4 [shape = 's32[1]{0}', space=sflag, size = 0x4, scoped, tag = 'scoped memory for tpu_custom_call.1']
    #allocation5 [shape = 'u8[8192]{0}', space=vmem, size = 0x2000, scoped, tag = 'output window, operand 0, single buffered']
    %8 = vsyncpa [#allocation3], 0
    %9 = vsyncpa [#allocation4], 0
    // Predicated region
    $region2: #{tpu_custom_call.1} parent=1 // pred_check
      _
    $region3: #{tpu_custom_call.1} parent=1 // pred_check_branch
      %11 = sbr.rel (0) target = $region5
    $region4: #{tpu_custom_call.1} parent=1 // pred_region
      %s13 = ssub.s32 512, 512
      %14 = vsyncadd [#allocation3], %s13
      %s15 = sshll.u32 [#allocation2], 4
      %s16 = int_to_ptr.vmem [resolvable:$true] %s15
      %21 = dma.hbm_to_vmem [thread:$0]  %s0, 512, %s16, [#allocation3], 256, 256, 16
    $region5: #{tpu_custom_call.1} parent=1 // pred_fallthru
      _
    // Predicated region
    $region6: #{tpu_custom_call.1} parent=1 // pred_check
      _
    $region7: #{tpu_custom_call.1} parent=1 // pred_check_branch
      %23 = sbr.rel (0) target = $region9
    $region8: #{tpu_custom_call.1} parent=1 // pred_region
      _
    $region9: #{tpu_custom_call.1} parent=1 // pred_fallthru
      _
    // Predicated region
    $region10: #{tpu_custom_call.1} parent=1 // pred_check
      _
    $region11: #{tpu_custom_call.1} parent=1 // pred_check_branch
      %25 = sbr.rel (0) target = $region13
    $region12: #{tpu_custom_call.1} parent=1 // pred_region
      _
    $region13: #{tpu_custom_call.1} parent=1 // pred_fallthru
      _
    // Predicated region
    $region14: #{tpu_custom_call.1} parent=1 // pred_check
      _
    $region15: #{tpu_custom_call.1} parent=1 // pred_check_branch
      %27 = sbr.rel (0) target = $region17
    $region16: #{tpu_custom_call.1} parent=1 // pred_region
      %28 = dma.done [#allocation3], 512
    $region17: #{tpu_custom_call.1} parent=1 // pred_fallthru
      _
    %v29 = vld [vmem:[#allocation2] sm:$0xff]
    %v30 = vld [vmem:[#allocation2 + $0x8] sm:$0xff]
    %v31 = vld [vmem:[#allocation2 + $0x10] sm:$0xff]
    %v32 = vld [vmem:[#allocation2 + $0x18] sm:$0xff]
    %v33 = vld [vmem:[%s1] sm:$0xf]
    %34 = vxpose.xlu0.b32.start [1/16] %v29, 128
    %35 = vxpose.xlu0.b32.cont [2/16] 0.0, 128
    %36 = vxpose.xlu0.b32.cont [3/16] 0.0, 128
    %37 = vxpose.xlu0.b32.cont [4/16] 0.0, 128
    %38 = vxpose.xlu0.b32.cont [5/16] 0.0, 128
    %39 = vxpose.xlu0.b32.cont [6/16] 0.0, 128
    %40 = vxpose.xlu0.b32.cont [7/16] 0.0, 128
    %41 = vxpose.xlu0.b32.cont [8/16] 0.0, 128
    %42 = vxpose.xlu0.b32.cont [9/16] 0.0, 128
    %43 = vxpose.xlu0.b32.cont [10/16] 0.0, 128
    %44 = vxpose.xlu0.b32.cont [11/16] 0.0, 128
    %45 = vxpose.xlu0.b32.cont [12/16] 0.0, 128
    %46 = vxpose.xlu0.b32.cont [13/16] 0.0, 128
    %47 = vxpose.xlu0.b32.cont [14/16] 0.0, 128
    %48 = vxpose.xlu0.b32.cont [15/16] 0.0, 128
    %49 = vxpose.xlu0.b32.end [16/16] 0.0, 128
    %v50 = vpop.trf.xlu0
    %v51 = vpop.trf.xlu0
    %v52 = vpop.trf.xlu0
    %v53 = vpop.trf.xlu0
    %v54 = vpop.trf.xlu0
    %v55 = vpop.trf.xlu0
    %v56 = vpop.trf.xlu0
    %v57 = vpop.trf.xlu0
    %v58 = vpop.trf.xlu0
    %v59 = vpop.trf.xlu0
    %v60 = vpop.trf.xlu0
    %v61 = vpop.trf.xlu0
    %v62 = vpop.trf.xlu0
    %v63 = vpop.trf.xlu0
    %v64 = vpop.trf.xlu0
    %v65 = vpop.trf.xlu0
    %66 = vxpose.xlu0.b32.start [1/16] %v30, 128
    %67 = vxpose.xlu0.b32.cont [2/16] 0.0, 128
    %68 = vxpose.xlu0.b32.cont [3/16] 0.0, 128
    %69 = vxpose.xlu0.b32.cont [4/16] 0.0, 128
    %70 = vxpose.xlu0.b32.cont [5/16] 0.0, 128
    %71 = vxpose.xlu0.b32.cont [6/16] 0.0, 128
    %72 = vxpose.xlu0.b32.cont [7/16] 0.0, 128
    %73 = vxpose.xlu0.b32.cont [8/16] 0.0, 128
    %74 = vxpose.xlu0.b32.cont [9/16] 0.0, 128
    %75 = vxpose.xlu0.b32.cont [10/16] 0.0, 128
    %76 = vxpose.xlu0.b32.cont [11/16] 0.0, 128
    %77 = vxpose.xlu0.b32.cont [12/16] 0.0, 128
    %78 = vxpose.xlu0.b32.cont [13/16] 0.0, 128
    %79 = vxpose.xlu0.b32.cont [14/16] 0.0, 128
    %80 = vxpose.xlu0.b32.cont [15/16] 0.0, 128
    %81 = vxpose.xlu0.b32.end [16/16] 0.0, 128
    %v82 = vpop.trf.xlu0
    %v83 = vpop.trf.xlu0
    %v84 = vpop.trf.xlu0
    %v85 = vpop.trf.xlu0
    %v86 = vpop.trf.xlu0
    %v87 = vpop.trf.xlu0
    %v88 = vpop.trf.xlu0
    %v89 = vpop.trf.xlu0
    %v90 = vpop.trf.xlu0
    %v91 = vpop.trf.xlu0
    %v92 = vpop.trf.xlu0
    %v93 = vpop.trf.xlu0
    %v94 = vpop.trf.xlu0
    %v95 = vpop.trf.xlu0
    %v96 = vpop.trf.xlu0
    %v97 = vpop.trf.xlu0
    %98 = vxpose.xlu0.b32.start [1/16] %v31, 128
    %99 = vxpose.xlu0.b32.cont [2/16] 0.0, 128
    %100 = vxpose.xlu0.b32.cont [3/16] 0.0, 128
    %101 = vxpose.xlu0.b32.cont [4/16] 0.0, 128
    %102 = vxpose.xlu0.b32.cont [5/16] 0.0, 128
    %103 = vxpose.xlu0.b32.cont [6/16] 0.0, 128
    %104 = vxpose.xlu0.b32.cont [7/16] 0.0, 128
    %105 = vxpose.xlu0.b32.cont [8/16] 0.0, 128
    %106 = vxpose.xlu0.b32.cont [9/16] 0.0, 128
    %107 = vxpose.xlu0.b32.cont [10/16] 0.0, 128
    %108 = vxpose.xlu0.b32.cont [11/16] 0.0, 128
    %109 = vxpose.xlu0.b32.cont [12/16] 0.0, 128
    %110 = vxpose.xlu0.b32.cont [13/16] 0.0, 128
    %111 = vxpose.xlu0.b32.cont [14/16] 0.0, 128
    %112 = vxpose.xlu0.b32.cont [15/16] 0.0, 128
    %113 = vxpose.xlu0.b32.end [16/16] 0.0, 128
    %v114 = vpop.trf.xlu0
    %v115 = vpop.trf.xlu0
    %v116 = vpop.trf.xlu0
    %v117 = vpop.trf.xlu0
    %v118 = vpop.trf.xlu0
    %v119 = vpop.trf.xlu0
    %v120 = vpop.trf.xlu0
    %v121 = vpop.trf.xlu0
    %v122 = vpop.trf.xlu0
    %v123 = vpop.trf.xlu0
    %v124 = vpop.trf.xlu0
    %v125 = vpop.trf.xlu0
    %v126 = vpop.trf.xlu0
    %v127 = vpop.trf.xlu0
    %v128 = vpop.trf.xlu0
    %v129 = vpop.trf.xlu0
    %130 = vxpose.xlu0.b32.start [1/16] %v32, 128
    %131 = vxpose.xlu0.b32.cont [2/16] 0.0, 128
    %132 = vxpose.xlu0.b32.cont [3/16] 0.0, 128
    %133 = vxpose.xlu0.b32.cont [4/16] 0.0, 128
    %134 = vxpose.xlu0.b32.cont [5/16] 0.0, 128
    %135 = vxpose.xlu0.b32.cont [6/16] 0.0, 128
    %136 = vxpose.xlu0.b32.cont [7/16] 0.0, 128
    %137 = vxpose.xlu0.b32.cont [8/16] 0.0, 128
    %138 = vxpose.xlu0.b32.cont [9/16] 0.0, 128
    %139 = vxpose.xlu0.b32.cont [10/16] 0.0, 128
    %140 = vxpose.xlu0.b32.cont [11/16] 0.0, 128
    %141 = vxpose.xlu0.b32.cont [12/16] 0.0, 128
    %142 = vxpose.xlu0.b32.cont [13/16] 0.0, 128
    %143 = vxpose.xlu0.b32.cont [14/16] 0.0, 128
    %144 = vxpose.xlu0.b32.cont [15/16] 0.0, 128
    %145 = vxpose.xlu0.b32.end [16/16] 0.0, 128
    %v146 = vpop.trf.xlu0
    %v147 = vpop.trf.xlu0
    %v148 = vpop.trf.xlu0
    %v149 = vpop.trf.xlu0
    %v150 = vpop.trf.xlu0
    %v151 = vpop.trf.xlu0
    %v152 = vpop.trf.xlu0
    %v153 = vpop.trf.xlu0
    %v154 = vpop.trf.xlu0
    %v155 = vpop.trf.xlu0
    %v156 = vpop.trf.xlu0
    %v157 = vpop.trf.xlu0
    %v158 = vpop.trf.xlu0
    %v159 = vpop.trf.xlu0
    %v160 = vpop.trf.xlu0
    %v161 = vpop.trf.xlu0
    %vm162 = vcmask 64512
    %v164 = vsel %vm162, %v50, 0
    %v167 = vsel %vm162, %v51, 0
    %v170 = vsel %vm162, %v52, 0
    %v173 = vsel %vm162, %v53, 0
    %v176 = vsel %vm162, %v54, 0
    %v179 = vsel %vm162, %v55, 0
    %v182 = vsel %vm162, %v56, 0
    %v185 = vsel %vm162, %v57, 0
    %v188 = vsel %vm162, %v58, 0
    %v191 = vsel %vm162, %v59, 0
    %v194 = vsel %vm162, %v60, 0
    %v197 = vsel %vm162, %v61, 0
    %v200 = vsel %vm162, %v62, 0
    %v203 = vsel %vm162, %v63, 0
    %v206 = vsel %vm162, %v64, 0
    %v209 = vsel %vm162, %v65, 0
    %v212 = vsel %vm162, %v82, 0
    %v215 = vsel %vm162, %v83, 0
    %v218 = vsel %vm162, %v84, 0
    %v221 = vsel %vm162, %v85, 0
    %v224 = vsel %vm162, %v86, 0
    %v227 = vsel %vm162, %v87, 0
    %v230 = vsel %vm162, %v88, 0
    %v233 = vsel %vm162, %v89, 0
    %v236 = vsel %vm162, %v90, 0
    %v239 = vsel %vm162, %v91, 0
    %v242 = vsel %vm162, %v92, 0
    %v245 = vsel %vm162, %v93, 0
    %v248 = vsel %vm162, %v94, 0
    %v251 = vsel %vm162, %v95, 0
    %v254 = vsel %vm162, %v96, 0
    %v257 = vsel %vm162, %v97, 0
    %v260 = vsel %vm162, %v114, 0
    %v263 = vsel %vm162, %v115, 0
    %v266 = vsel %vm162, %v116, 0
    %v269 = vsel %vm162, %v117, 0
    %v272 = vsel %vm162, %v118, 0
    %v275 = vsel %vm162, %v119, 0
    %v278 = vsel %vm162, %v120, 0
    %v281 = vsel %vm162, %v121, 0
    %v284 = vsel %vm162, %v122, 0
    %v287 = vsel %vm162, %v123, 0
    %v290 = vsel %vm162, %v124, 0
    %v293 = vsel %vm162, %v125, 0
    %v296 = vsel %vm162, %v126, 0
    %v299 = vsel %vm162, %v127, 0
    %v302 = vsel %vm162, %v128, 0
    %v305 = vsel %vm162, %v129, 0
    %v308 = vsel %vm162, %v146, 0
    %v311 = vsel %vm162, %v147, 0
    %v314 = vsel %vm162, %v148, 0
    %v317 = vsel %vm162, %v149, 0
    %v320 = vsel %vm162, %v150, 0
    %v323 = vsel %vm162, %v151, 0
    %v326 = vsel %vm162, %v152, 0
    %v329 = vsel %vm162, %v153, 0
    %v332 = vsel %vm162, %v154, 0
    %v335 = vsel %vm162, %v155, 0
    %v338 = vsel %vm162, %v156, 0
    %v341 = vsel %vm162, %v157, 0
    %v344 = vsel %vm162, %v158, 0
    %v347 = vsel %vm162, %v159, 0
    %v350 = vsel %vm162, %v160, 0
    %v353 = vsel %vm162, %v161, 0
    %v356 = vsel %vm162, %v33, 0
    %358 = vmatprep.subr.mxu0 0.0
    %359 = vmatpush1.xpose.msra.mxu0 0.0
    %360 = vmatprep.subr.mxu0 0.0
    %361 = vmatpush1.xpose.msra.mxu0 0.0
    %362 = vmatprep.subr.mxu0 0.0
    %363 = vmatpush1.xpose.msra.mxu0 0.0
    %364 = vmatprep.subr.mxu0 0.0
    %365 = vmatpush1.xpose.msra.mxu0 0.0
    %366 = vmatprep.subr.mxu0 0.0
    %367 = vmatpush1.xpose.msra.mxu0 0.0
    %368 = vmatprep.subr.mxu0 0.0
    %369 = vmatpush1.xpose.msra.mxu0 0.0
    %370 = vmatprep.subr.mxu0 0.0
    %371 = vmatpush1.xpose.msra.mxu0 0.0
    %372 = vmatprep.subr.mxu0 0.0
    %373 = vmatpush1.xpose.msra.mxu0 0.0
    %374 = vmatprep.subr.mxu0 0.0
    %375 = vmatpush1.xpose.msra.mxu0 0.0
    %376 = vmatprep.subr.mxu0 0.0
    %377 = vmatpush1.xpose.msra.mxu0 0.0
    %378 = vmatprep.subr.mxu0 0.0
    %379 = vmatpush1.xpose.msra.mxu0 0.0
    %380 = vmatprep.subr.mxu0 0.0
    %381 = vmatpush1.xpose.msra.mxu0 0.0
    %382 = vmatprep.subr.mxu0 0.0
    %383 = vmatpush1.xpose.msra.mxu0 0.0
    %384 = vmatprep.subr.mxu0 0.0
    %385 = vmatpush1.xpose.msra.mxu0 0.0
    %386 = vmatprep.subr.mxu0 0.0
    %387 = vmatpush1.xpose.msra.mxu0 0.0
    %388 = vmatprep.subr.mxu0 0.0
    %389 = vmatpush1.xpose.msra.mxu0 %v356
    %390 = vmatprep.subr.mxu0 0.0
    %391 = vmatpush2.xpose.msra.mxu0 0.0
    %392 = vmatprep.subr.mxu0 0.0
    %393 = vmatpush2.xpose.msra.mxu0 0.0
    %394 = vmatprep.subr.mxu0 0.0
    %395 = vmatpush2.xpose.msra.mxu0 0.0
    %396 = vmatprep.subr.mxu0 0.0
    %397 = vmatpush2.xpose.msra.mxu0 0.0
    %398 = vmatprep.subr.mxu0 0.0
    %399 = vmatpush2.xpose.msra.mxu0 0.0
    %400 = vmatprep.subr.mxu0 0.0
    %401 = vmatpush2.xpose.msra.mxu0 0.0
    %402 = vmatprep.subr.mxu0 0.0
    %403 = vmatpush2.xpose.msra.mxu0 0.0
    %404 = vmatprep.subr.mxu0 0.0
    %405 = vmatpush2.xpose.msra.mxu0 0.0
    %406 = vmatprep.subr.mxu0 0.0
    %407 = vmatpush2.xpose.msra.mxu0 0.0
    %408 = vmatprep.subr.mxu0 0.0
    %409 = vmatpush2.xpose.msra.mxu0 0.0
    %410 = vmatprep.subr.mxu0 0.0
    %411 = vmatpush2.xpose.msra.mxu0 0.0
    %412 = vmatprep.subr.mxu0 0.0
    %413 = vmatpush2.xpose.msra.mxu0 0.0
    %414 = vmatprep.subr.mxu0 0.0
    %415 = vmatpush2.xpose.msra.mxu0 0.0
    %416 = vmatprep.subr.mxu0 0.0
    %417 = vmatpush2.xpose.msra.mxu0 0.0
    %418 = vmatprep.subr.mxu0 0.0
    %419 = vmatpush2.xpose.msra.mxu0 0.0
    %420 = vmatprep.subr.mxu0 0.0
    %421 = vmatpush2.xpose.msra.mxu0 0.0
    %422 = vmatprep.mubr.f32.mxu0 0.0
    %423 = vmatmul.mubr.f32.gmra.mxu0 %v164
    %v424 = vpop.f32.mrf.mxu0
    %v425 = vadd.f32 0.0, %v424
    %v426 = vpop.f32.mrf.mxu0
    %427 = vmatprep.mubr.f32.mxu0 0.0
    %428 = vmatmul.mubr.f32.gmra.mxu0 %v167
    %v429 = vpop.f32.mrf.mxu0
    %v430 = vadd.f32 0.0, %v429
    %v431 = vpop.f32.mrf.mxu0
    %432 = vmatprep.mubr.f32.mxu0 0.0
    %433 = vmatmul.mubr.f32.gmra.mxu0 %v170
    %v434 = vpop.f32.mrf.mxu0
    %v435 = vadd.f32 0.0, %v434
    %v436 = vpop.f32.mrf.mxu0
    %437 = vmatprep.mubr.f32.mxu0 0.0
    %438 = vmatmul.mubr.f32.gmra.mxu0 %v173
    %v439 = vpop.f32.mrf.mxu0
    %v440 = vadd.f32 0.0, %v439
    %v441 = vpop.f32.mrf.mxu0
    %442 = vmatprep.mubr.f32.mxu0 0.0
    %443 = vmatmul.mubr.f32.gmra.mxu0 %v176
    %v444 = vpop.f32.mrf.mxu0
    %v445 = vadd.f32 0.0, %v444
    %v446 = vpop.f32.mrf.mxu0
    %447 = vmatprep.mubr.f32.mxu0 0.0
    %448 = vmatmul.mubr.f32.gmra.mxu0 %v179
    %v449 = vpop.f32.mrf.mxu0
    %v450 = vadd.f32 0.0, %v449
    %v451 = vpop.f32.mrf.mxu0
    %452 = vmatprep.mubr.f32.mxu0 0.0
    %453 = vmatmul.mubr.f32.gmra.mxu0 %v182
    %v454 = vpop.f32.mrf.mxu0
    %v455 = vadd.f32 0.0, %v454
    %v456 = vpop.f32.mrf.mxu0
    %457 = vmatprep.mubr.f32.mxu0 0.0
    %458 = vmatmul.mubr.f32.gmra.mxu0 %v185
    %v459 = vpop.f32.mrf.mxu0
    %v460 = vadd.f32 0.0, %v459
    %v461 = vpop.f32.mrf.mxu0
    %462 = vmatprep.mubr.f32.mxu0 0.0
    %463 = vmatmul.mubr.f32.gmra.mxu0 %v188
    %v464 = vpop.f32.mrf.mxu0
    %v465 = vadd.f32 0.0, %v464
    %v466 = vpop.f32.mrf.mxu0
    %467 = vmatprep.mubr.f32.mxu0 0.0
    %468 = vmatmul.mubr.f32.gmra.mxu0 %v191
    %v469 = vpop.f32.mrf.mxu0
    %v470 = vadd.f32 0.0, %v469
    %v471 = vpop.f32.mrf.mxu0
    %472 = vmatprep.mubr.f32.mxu0 0.0
    %473 = vmatmul.mubr.f32.gmra.mxu0 %v194
    %v474 = vpop.f32.mrf.mxu0
    %v475 = vadd.f32 0.0, %v474
    %v476 = vpop.f32.mrf.mxu0
    %477 = vmatprep.mubr.f32.mxu0 0.0
    %478 = vmatmul.mubr.f32.gmra.mxu0 %v197
    %v479 = vpop.f32.mrf.mxu0
    %v480 = vadd.f32 0.0, %v479
    %v481 = vpop.f32.mrf.mxu0
    %482 = vmatprep.mubr.f32.mxu0 0.0
    %483 = vmatmul.mubr.f32.gmra.mxu0 %v200
    %v484 = vpop.f32.mrf.mxu0
    %v485 = vadd.f32 0.0, %v484
    %v486 = vpop.f32.mrf.mxu0
    %487 = vmatprep.mubr.f32.mxu0 0.0
    %488 = vmatmul.mubr.f32.gmra.mxu0 %v203
    %v489 = vpop.f32.mrf.mxu0
    %v490 = vadd.f32 0.0, %v489
    %v491 = vpop.f32.mrf.mxu0
    %492 = vmatprep.mubr.f32.mxu0 0.0
    %493 = vmatmul.mubr.f32.gmra.mxu0 %v206
    %v494 = vpop.f32.mrf.mxu0
    %v495 = vadd.f32 0.0, %v494
    %v496 = vpop.f32.mrf.mxu0
    %497 = vmatprep.mubr.f32.mxu0 0.0
    %498 = vmatmul.mubr.f32.gmra.mxu0 %v209
    %v499 = vpop.f32.mrf.mxu0
    %v500 = vadd.f32 0.0, %v499
    %v501 = vpop.f32.mrf.mxu0
    %502 = vmatprep.mubr.f32.mxu0 0.0
    %503 = vmatmul.mubr.f32.gmra.mxu0 %v212
    %v504 = vpop.f32.mrf.mxu0
    %v505 = vadd.f32 0.0, %v504
    %v506 = vpop.f32.mrf.mxu0
    %507 = vmatprep.mubr.f32.mxu0 0.0
    %508 = vmatmul.mubr.f32.gmra.mxu0 %v215
    %v509 = vpop.f32.mrf.mxu0
    %v510 = vadd.f32 0.0, %v509
    %v511 = vpop.f32.mrf.mxu0
    %512 = vmatprep.mubr.f32.mxu0 0.0
    %513 = vmatmul.mubr.f32.gmra.mxu0 %v218
    %v514 = vpop.f32.mrf.mxu0
    %v515 = vadd.f32 0.0, %v514
    %v516 = vpop.f32.mrf.mxu0
    %517 = vmatprep.mubr.f32.mxu0 0.0
    %518 = vmatmul.mubr.f32.gmra.mxu0 %v221
    %v519 = vpop.f32.mrf.mxu0
    %v520 = vadd.f32 0.0, %v519
    %v521 = vpop.f32.mrf.mxu0
    %522 = vmatprep.mubr.f32.mxu0 0.0
    %523 = vmatmul.mubr.f32.gmra.mxu0 %v224
    %v524 = vpop.f32.mrf.mxu0
    %v525 = vadd.f32 0.0, %v524
    %v526 = vpop.f32.mrf.mxu0
    %527 = vmatprep.mubr.f32.mxu0 0.0
    %528 = vmatmul.mubr.f32.gmra.mxu0 %v227
    %v529 = vpop.f32.mrf.mxu0
    %v530 = vadd.f32 0.0, %v529
    %v531 = vpop.f32.mrf.mxu0
    %532 = vmatprep.mubr.f32.mxu0 0.0
    %533 = vmatmul.mubr.f32.gmra.mxu0 %v230
    %v534 = vpop.f32.mrf.mxu0
    %v535 = vadd.f32 0.0, %v534
    %v536 = vpop.f32.mrf.mxu0
    %537 = vmatprep.mubr.f32.mxu0 0.0
    %538 = vmatmul.mubr.f32.gmra.mxu0 %v233
    %v539 = vpop.f32.mrf.mxu0
    %v540 = vadd.f32 0.0, %v539
    %v541 = vpop.f32.mrf.mxu0
    %542 = vmatprep.mubr.f32.mxu0 0.0
    %543 = vmatmul.mubr.f32.gmra.mxu0 %v236
    %v544 = vpop.f32.mrf.mxu0
    %v545 = vadd.f32 0.0, %v544
    %v546 = vpop.f32.mrf.mxu0
    %547 = vmatprep.mubr.f32.mxu0 0.0
    %548 = vmatmul.mubr.f32.gmra.mxu0 %v239
    %v549 = vpop.f32.mrf.mxu0
    %v550 = vadd.f32 0.0, %v549
    %v551 = vpop.f32.mrf.mxu0
    %552 = vmatprep.mubr.f32.mxu0 0.0
    %553 = vmatmul.mubr.f32.gmra.mxu0 %v242
    %v554 = vpop.f32.mrf.mxu0
    %v555 = vadd.f32 0.0, %v554
    %v556 = vpop.f32.mrf.mxu0
    %557 = vmatprep.mubr.f32.mxu0 0.0
    %558 = vmatmul.mubr.f32.gmra.mxu0 %v245
    %v559 = vpop.f32.mrf.mxu0
    %v560 = vadd.f32 0.0, %v559
    %v561 = vpop.f32.mrf.mxu0
    %562 = vmatprep.mubr.f32.mxu0 0.0
    %563 = vmatmul.mubr.f32.gmra.mxu0 %v248
    %v564 = vpop.f32.mrf.mxu0
    %v565 = vadd.f32 0.0, %v564
    %v566 = vpop.f32.mrf.mxu0
    %567 = vmatprep.mubr.f32.mxu0 0.0
    %568 = vmatmul.mubr.f32.gmra.mxu0 %v251
    %v569 = vpop.f32.mrf.mxu0
    %v570 = vadd.f32 0.0, %v569
    %v571 = vpop.f32.mrf.mxu0
    %572 = vmatprep.mubr.f32.mxu0 0.0
    %573 = vmatmul.mubr.f32.gmra.mxu0 %v254
    %v574 = vpop.f32.mrf.mxu0
    %v575 = vadd.f32 0.0, %v574
    %v576 = vpop.f32.mrf.mxu0
    %577 = vmatprep.mubr.f32.mxu0 0.0
    %578 = vmatmul.mubr.f32.gmra.mxu0 %v257
    %v579 = vpop.f32.mrf.mxu0
    %v580 = vadd.f32 0.0, %v579
    %v581 = vpop.f32.mrf.mxu0
    %582 = vmatprep.mubr.f32.mxu0 0.0
    %583 = vmatmul.mubr.f32.gmra.mxu0 %v260
    %v584 = vpop.f32.mrf.mxu0
    %v585 = vadd.f32 0.0, %v584
    %v586 = vpop.f32.mrf.mxu0
    %587 = vmatprep.mubr.f32.mxu0 0.0
    %588 = vmatmul.mubr.f32.gmra.mxu0 %v263
    %v589 = vpop.f32.mrf.mxu0
    %v590 = vadd.f32 0.0, %v589
    %v591 = vpop.f32.mrf.mxu0
    %592 = vmatprep.mubr.f32.mxu0 0.0
    %593 = vmatmul.mubr.f32.gmra.mxu0 %v266
    %v594 = vpop.f32.mrf.mxu0
    %v595 = vadd.f32 0.0, %v594
    %v596 = vpop.f32.mrf.mxu0
    %597 = vmatprep.mubr.f32.mxu0 0.0
    %598 = vmatmul.mubr.f32.gmra.mxu0 %v269
    %v599 = vpop.f32.mrf.mxu0
    %v600 = vadd.f32 0.0, %v599
    %v601 = vpop.f32.mrf.mxu0
    %602 = vmatprep.mubr.f32.mxu0 0.0
    %603 = vmatmul.mubr.f32.gmra.mxu0 %v272
    %v604 = vpop.f32.mrf.mxu0
    %v605 = vadd.f32 0.0, %v604
    %v606 = vpop.f32.mrf.mxu0
    %607 = vmatprep.mubr.f32.mxu0 0.0
    %608 = vmatmul.mubr.f32.gmra.mxu0 %v275
    %v609 = vpop.f32.mrf.mxu0
    %v610 = vadd.f32 0.0, %v609
    %v611 = vpop.f32.mrf.mxu0
    %612 = vmatprep.mubr.f32.mxu0 0.0
    %613 = vmatmul.mubr.f32.gmra.mxu0 %v278
    %v614 = vpop.f32.mrf.mxu0
    %v615 = vadd.f32 0.0, %v614
    %v616 = vpop.f32.mrf.mxu0
    %617 = vmatprep.mubr.f32.mxu0 0.0
    %618 = vmatmul.mubr.f32.gmra.mxu0 %v281
    %v619 = vpop.f32.mrf.mxu0
    %v620 = vadd.f32 0.0, %v619
    %v621 = vpop.f32.mrf.mxu0
    %622 = vmatprep.mubr.f32.mxu0 0.0
    %623 = vmatmul.mubr.f32.gmra.mxu0 %v284
    %v624 = vpop.f32.mrf.mxu0
    %v625 = vadd.f32 0.0, %v624
    %v626 = vpop.f32.mrf.mxu0
    %627 = vmatprep.mubr.f32.mxu0 0.0
    %628 = vmatmul.mubr.f32.gmra.mxu0 %v287
    %v629 = vpop.f32.mrf.mxu0
    %v630 = vadd.f32 0.0, %v629
    %v631 = vpop.f32.mrf.mxu0
    %632 = vmatprep.mubr.f32.mxu0 0.0
    %633 = vmatmul.mubr.f32.gmra.mxu0 %v290
    %v634 = vpop.f32.mrf.mxu0
    %v635 = vadd.f32 0.0, %v634
    %v636 = vpop.f32.mrf.mxu0
    %637 = vmatprep.mubr.f32.mxu0 0.0
    %638 = vmatmul.mubr.f32.gmra.mxu0 %v293
    %v639 = vpop.f32.mrf.mxu0
    %v640 = vadd.f32 0.0, %v639
    %v641 = vpop.f32.mrf.mxu0
    %642 = vmatprep.mubr.f32.mxu0 0.0
    %643 = vmatmul.mubr.f32.gmra.mxu0 %v296
    %v644 = vpop.f32.mrf.mxu0
    %v645 = vadd.f32 0.0, %v644
    %v646 = vpop.f32.mrf.mxu0
    %647 = vmatprep.mubr.f32.mxu0 0.0
    %648 = vmatmul.mubr.f32.gmra.mxu0 %v299
    %v649 = vpop.f32.mrf.mxu0
    %v650 = vadd.f32 0.0, %v649
    %v651 = vpop.f32.mrf.mxu0
    %652 = vmatprep.mubr.f32.mxu0 0.0
    %653 = vmatmul.mubr.f32.gmra.mxu0 %v302
    %v654 = vpop.f32.mrf.mxu0
    %v655 = vadd.f32 0.0, %v654
    %v656 = vpop.f32.mrf.mxu0
    %657 = vmatprep.mubr.f32.mxu0 0.0
    %658 = vmatmul.mubr.f32.gmra.mxu0 %v305
    %v659 = vpop.f32.mrf.mxu0
    %v660 = vadd.f32 0.0, %v659
    %v661 = vpop.f32.mrf.mxu0
    %662 = vmatprep.mubr.f32.mxu0 0.0
    %663 = vmatmul.mubr.f32.gmra.mxu0 %v308
    %v664 = vpop.f32.mrf.mxu0
    %v665 = vadd.f32 0.0, %v664
    %v666 = vpop.f32.mrf.mxu0
    %667 = vmatprep.mubr.f32.mxu0 0.0
    %668 = vmatmul.mubr.f32.gmra.mxu0 %v311
    %v669 = vpop.f32.mrf.mxu0
    %v670 = vadd.f32 0.0, %v669
    %v671 = vpop.f32.mrf.mxu0
    %672 = vmatprep.mubr.f32.mxu0 0.0
    %673 = vmatmul.mubr.f32.gmra.mxu0 %v314
    %v674 = vpop.f32.mrf.mxu0
    %v675 = vadd.f32 0.0, %v674
    %v676 = vpop.f32.mrf.mxu0
    %677 = vmatprep.mubr.f32.mxu0 0.0
    %678 = vmatmul.mubr.f32.gmra.mxu0 %v317
    %v679 = vpop.f32.mrf.mxu0
    %v680 = vadd.f32 0.0, %v679
    %v681 = vpop.f32.mrf.mxu0
    %682 = vmatprep.mubr.f32.mxu0 0.0
    %683 = vmatmul.mubr.f32.gmra.mxu0 %v320
    %v684 = vpop.f32.mrf.mxu0
    %v685 = vadd.f32 0.0, %v684
    %v686 = vpop.f32.mrf.mxu0
    %687 = vmatprep.mubr.f32.mxu0 0.0
    %688 = vmatmul.mubr.f32.gmra.mxu0 %v323
    %v689 = vpop.f32.mrf.mxu0
    %v690 = vadd.f32 0.0, %v689
    %v691 = vpop.f32.mrf.mxu0
    %692 = vmatprep.mubr.f32.mxu0 0.0
    %693 = vmatmul.mubr.f32.gmra.mxu0 %v326
    %v694 = vpop.f32.mrf.mxu0
    %v695 = vadd.f32 0.0, %v694
    %v696 = vpop.f32.mrf.mxu0
    %697 = vmatprep.mubr.f32.mxu0 0.0
    %698 = vmatmul.mubr.f32.gmra.mxu0 %v329
    %v699 = vpop.f32.mrf.mxu0
    %v700 = vadd.f32 0.0, %v699
    %v701 = vpop.f32.mrf.mxu0
    %702 = vmatprep.mubr.f32.mxu0 0.0
    %703 = vmatmul.mubr.f32.gmra.mxu0 %v332
    %v704 = vpop.f32.mrf.mxu0
    %v705 = vadd.f32 0.0, %v704
    %v706 = vpop.f32.mrf.mxu0
    %707 = vmatprep.mubr.f32.mxu0 0.0
    %708 = vmatmul.mubr.f32.gmra.mxu0 %v335
    %v709 = vpop.f32.mrf.mxu0
    %v710 = vadd.f32 0.0, %v709
    %v711 = vpop.f32.mrf.mxu0
    %712 = vmatprep.mubr.f32.mxu0 0.0
    %713 = vmatmul.mubr.f32.gmra.mxu0 %v338
    %v714 = vpop.f32.mrf.mxu0
    %v715 = vadd.f32 0.0, %v714
    %v716 = vpop.f32.mrf.mxu0
    %717 = vmatprep.mubr.f32.mxu0 0.0
    %718 = vmatmul.mubr.f32.gmra.mxu0 %v341
    %v719 = vpop.f32.mrf.mxu0
    %v720 = vadd.f32 0.0, %v719
    %v721 = vpop.f32.mrf.mxu0
    %722 = vmatprep.mubr.f32.mxu0 0.0
    %723 = vmatmul.mubr.f32.gmra.mxu0 %v344
    %v724 = vpop.f32.mrf.mxu0
    %v725 = vadd.f32 0.0, %v724
    %v726 = vpop.f32.mrf.mxu0
    %727 = vmatprep.mubr.f32.mxu0 0.0
    %728 = vmatmul.mubr.f32.gmra.mxu0 %v347
    %v729 = vpop.f32.mrf.mxu0
    %v730 = vadd.f32 0.0, %v729
    %v731 = vpop.f32.mrf.mxu0
    %732 = vmatprep.mubr.f32.mxu0 0.0
    %733 = vmatmul.mubr.f32.gmra.mxu0 %v350
    %v734 = vpop.f32.mrf.mxu0
    %v735 = vadd.f32 0.0, %v734
    %v736 = vpop.f32.mrf.mxu0
    %737 = vmatprep.mubr.f32.mxu0 0.0
    %738 = vmatmul.mubr.f32.gmra.mxu0 %v353
    %v739 = vpop.f32.mrf.mxu0
    %v740 = vadd.f32 0.0, %v739
    %v741 = vpop.f32.mrf.mxu0
    %742 = vdwg.mxu0
    %743 = vxpose.xlu0.b32.start [1/16] %v425, 128
    %744 = vxpose.xlu0.b32.cont [2/16] %v430, 128
    %745 = vxpose.xlu0.b32.cont [3/16] %v435, 128
    %746 = vxpose.xlu0.b32.cont [4/16] %v440, 128
    %747 = vxpose.xlu0.b32.cont [5/16] %v445, 128
    %748 = vxpose.xlu0.b32.cont [6/16] %v450, 128
    %749 = vxpose.xlu0.b32.cont [7/16] %v455, 128
    %750 = vxpose.xlu0.b32.cont [8/16] %v460, 128
    %751 = vxpose.xlu0.b32.cont [9/16] %v465, 128
    %752 = vxpose.xlu0.b32.cont [10/16] %v470, 128
    %753 = vxpose.xlu0.b32.cont [11/16] %v475, 128
    %754 = vxpose.xlu0.b32.cont [12/16] %v480, 128
    %755 = vxpose.xlu0.b32.cont [13/16] %v485, 128
    %756 = vxpose.xlu0.b32.cont [14/16] %v490, 128
    %757 = vxpose.xlu0.b32.cont [15/16] %v495, 128
    %758 = vxpose.xlu0.b32.end [16/16] %v500, 128
    %v759 = vpop.trf.xlu0
    %v760 = vpop.trf.xlu0
    %v761 = vpop.trf.xlu0
    %v762 = vpop.trf.xlu0
    %v763 = vpop.trf.xlu0
    %v764 = vpop.trf.xlu0
    %v765 = vpop.trf.xlu0
    %v766 = vpop.trf.xlu0
    %v767 = vpop.trf.xlu0
    %v768 = vpop.trf.xlu0
    %v769 = vpop.trf.xlu0
    %v770 = vpop.trf.xlu0
    %v771 = vpop.trf.xlu0
    %v772 = vpop.trf.xlu0
    %v773 = vpop.trf.xlu0
    %v774 = vpop.trf.xlu0
    %775 = vxpose.xlu0.b32.start [1/16] %v505, 128
    %776 = vxpose.xlu0.b32.cont [2/16] %v510, 128
    %777 = vxpose.xlu0.b32.cont [3/16] %v515, 128
    %778 = vxpose.xlu0.b32.cont [4/16] %v520, 128
    %779 = vxpose.xlu0.b32.cont [5/16] %v525, 128
    %780 = vxpose.xlu0.b32.cont [6/16] %v530, 128
    %781 = vxpose.xlu0.b32.cont [7/16] %v535, 128
    %782 = vxpose.xlu0.b32.cont [8/16] %v540, 128
    %783 = vxpose.xlu0.b32.cont [9/16] %v545, 128
    %784 = vxpose.xlu0.b32.cont [10/16] %v550, 128
    %785 = vxpose.xlu0.b32.cont [11/16] %v555, 128
    %786 = vxpose.xlu0.b32.cont [12/16] %v560, 128
    %787 = vxpose.xlu0.b32.cont [13/16] %v565, 128
    %788 = vxpose.xlu0.b32.cont [14/16] %v570, 128
    %789 = vxpose.xlu0.b32.cont [15/16] %v575, 128
    %790 = vxpose.xlu0.b32.end [16/16] %v580, 128
    %v791 = vpop.trf.xlu0
    %v792 = vpop.trf.xlu0
    %v793 = vpop.trf.xlu0
    %v794 = vpop.trf.xlu0
    %v795 = vpop.trf.xlu0
    %v796 = vpop.trf.xlu0
    %v797 = vpop.trf.xlu0
    %v798 = vpop.trf.xlu0
    %v799 = vpop.trf.xlu0
    %v800 = vpop.trf.xlu0
    %v801 = vpop.trf.xlu0
    %v802 = vpop.trf.xlu0
    %v803 = vpop.trf.xlu0
    %v804 = vpop.trf.xlu0
    %v805 = vpop.trf.xlu0
    %v806 = vpop.trf.xlu0
    %807 = vxpose.xlu0.b32.start [1/16] %v585, 128
    %808 = vxpose.xlu0.b32.cont [2/16] %v590, 128
    %809 = vxpose.xlu0.b32.cont [3/16] %v595, 128
    %810 = vxpose.xlu0.b32.cont [4/16] %v600, 128
    %811 = vxpose.xlu0.b32.cont [5/16] %v605, 128
    %812 = vxpose.xlu0.b32.cont [6/16] %v610, 128
    %813 = vxpose.xlu0.b32.cont [7/16] %v615, 128
    %814 = vxpose.xlu0.b32.cont [8/16] %v620, 128
    %815 = vxpose.xlu0.b32.cont [9/16] %v625, 128
    %816 = vxpose.xlu0.b32.cont [10/16] %v630, 128
    %817 = vxpose.xlu0.b32.cont [11/16] %v635, 128
    %818 = vxpose.xlu0.b32.cont [12/16] %v640, 128
    %819 = vxpose.xlu0.b32.cont [13/16] %v645, 128
    %820 = vxpose.xlu0.b32.cont [14/16] %v650, 128
    %821 = vxpose.xlu0.b32.cont [15/16] %v655, 128
    %822 = vxpose.xlu0.b32.end [16/16] %v660, 128
    %v823 = vpop.trf.xlu0
    %v824 = vpop.trf.xlu0
    %v825 = vpop.trf.xlu0
    %v826 = vpop.trf.xlu0
    %v827 = vpop.trf.xlu0
    %v828 = vpop.trf.xlu0
    %v829 = vpop.trf.xlu0
    %v830 = vpop.trf.xlu0
    %v831 = vpop.trf.xlu0
    %v832 = vpop.trf.xlu0
    %v833 = vpop.trf.xlu0
    %v834 = vpop.trf.xlu0
    %v835 = vpop.trf.xlu0
    %v836 = vpop.trf.xlu0
    %v837 = vpop.trf.xlu0
    %v838 = vpop.trf.xlu0
    %839 = vxpose.xlu0.b32.start [1/16] %v665, 128
    %840 = vxpose.xlu0.b32.cont [2/16] %v670, 128
    %841 = vxpose.xlu0.b32.cont [3/16] %v675, 128
    %842 = vxpose.xlu0.b32.cont [4/16] %v680, 128
    %843 = vxpose.xlu0.b32.cont [5/16] %v685, 128
    %844 = vxpose.xlu0.b32.cont [6/16] %v690, 128
    %845 = vxpose.xlu0.b32.cont [7/16] %v695, 128
    %846 = vxpose.xlu0.b32.cont [8/16] %v700, 128
    %847 = vxpose.xlu0.b32.cont [9/16] %v705, 128
    %848 = vxpose.xlu0.b32.cont [10/16] %v710, 128
    %849 = vxpose.xlu0.b32.cont [11/16] %v715, 128
    %850 = vxpose.xlu0.b32.cont [12/16] %v720, 128
    %851 = vxpose.xlu0.b32.cont [13/16] %v725, 128
    %852 = vxpose.xlu0.b32.cont [14/16] %v730, 128
    %853 = vxpose.xlu0.b32.cont [15/16] %v735, 128
    %854 = vxpose.xlu0.b32.end [16/16] %v740, 128
    %v855 = vpop.trf.xlu0
    %v856 = vpop.trf.xlu0
    %v857 = vpop.trf.xlu0
    %v858 = vpop.trf.xlu0
    %v859 = vpop.trf.xlu0
    %v860 = vpop.trf.xlu0
    %v861 = vpop.trf.xlu0
    %v862 = vpop.trf.xlu0
    %v863 = vpop.trf.xlu0
    %v864 = vpop.trf.xlu0
    %v865 = vpop.trf.xlu0
    %v866 = vpop.trf.xlu0
    %v867 = vpop.trf.xlu0
    %v868 = vpop.trf.xlu0
    %v869 = vpop.trf.xlu0
    %v870 = vpop.trf.xlu0
    %v871 = vld [vmem:[%s2] sm:$0xf]
    %873 = vset.pattern.permute.xlu0 0
    %874 = vperm.xlu0 %873, %v871
    %v875 = vpop.permute.xlu0 %874
    %v877 = vadd.f32 %v759, %v875
    %v878 = vadd.f32 %v791, %v875
    %v879 = vadd.f32 %v823, %v875
    %v880 = vadd.f32 %v855, %v875
    %v885 = vcombine.low %v877, %v878
    %v886 = vcombine.low %v879, %v880
    %889 = vst [vmem:[#allocation5] sm:$0xff] %v885
    %890 = vst [vmem:[#allocation5 + $0x8] sm:$0xff] %v886
    // Predicated region
    $region18: #{tpu_custom_call.1} parent=1 // pred_check
      _
    $region19: #{tpu_custom_call.1} parent=1 // pred_check_branch
      %892 = sbr.rel (0) target = $region21
    $region20: #{tpu_custom_call.1} parent=1 // pred_region
      %s894 = ssub.s32 256, 256
      %895 = vsyncadd [#allocation4], %s894
      %s896 = sshll.u32 [#allocation5], 4
      %s897 = int_to_ptr.vmem [resolvable:$true] %s896
      %902 = dma.vmem_to_hbm [thread:$0]  %s897, 256, %s3, [#allocation4], 128, 128, 8
    $region21: #{tpu_custom_call.1} parent=1 // pred_fallthru
      _
    // Predicated region
    $region22: #{tpu_custom_call.1} parent=1 // pred_check
      _
    $region23: #{tpu_custom_call.1} parent=1 // pred_check_branch
      %904 = sbr.rel (0) target = $region25
    $region24: #{tpu_custom_call.1} parent=1 // pred_region
      %905 = dma.done [#allocation4], 256
    $region25: #{tpu_custom_call.1} parent=1 // pred_fallthru
      _
    %906 = vsyncpa [#allocation3], 1
    %907 = vsyncpa [#allocation4], 1

</llo_original>
